<compile_context>
chip_gen: v7x
topology: tpu7x:2x2x1
jax: 0.10.0
libtpu: 0.0.40
codegen_flags: <defaults>
</compile_context>

<pallas_src>
import functools

import numpy as np

import jax
import jax.numpy as jnp
from jax import lax
from jax.experimental import pallas as pl
from jax.experimental.pallas import tpu as pltpu


def _round_up(x, m):
    return ((x + m - 1) // m) * m


def _pick_tile(dim, target, align):
    """Largest multiple of `align` that divides `dim` (a multiple of align) and is <= target."""
    if dim <= target:
        return dim
    t = max(align, (target // align) * align)
    while dim % t:
        t -= align
    return t


def _pad2d(w, row_align=128, col_align=128):
    K, N = w.shape
    Kp, Np = _round_up(K, row_align), _round_up(N, col_align)
    if (Kp, Np) != (K, N):
        w = jnp.pad(w, ((0, Kp - K), (0, Np - N)))
    return w


# ------------------------- tiled linear (MXU) ------------------------------

def _matmul_kernel(x_ref, w_ref, o_ref, acc_ref):
    @pl.when(pl.program_id(2) == 0)
    def _init():
        acc_ref[...] = jnp.zeros_like(acc_ref)

    acc_ref[...] += jnp.dot(x_ref[...], w_ref[...],
                            preferred_element_type=jnp.float32)

    @pl.when(pl.program_id(2) == pl.num_programs(2) - 1)
    def _finalize():
        o_ref[...] = acc_ref[...].astype(o_ref.dtype)


def linear(x, w_kn, *, out_dim=None, tm=512, tn=1024, tk=512):
    """y = (x @ w_kn)[:, :out_dim]; w_kn pre-padded to 128-multiples at load time."""
    M, K = x.shape
    Kp, Np = w_kn.shape
    assert Kp % 128 == 0 and Np % 128 == 0 and Kp >= K
    out_dim = Np if out_dim is None else out_dim

    tm = min(tm, _round_up(M, 8))
    tk = _pick_tile(Kp, tk, 128)
    tn = _pick_tile(Np, tn, 128)
    Mp = _round_up(M, tm)

    # Only the activation is ever padded per call (weights padded once).
    if (Mp, Kp) != (M, K):
        x = jnp.pad(x, ((0, Mp - M), (0, Kp - K)))

    out = pl.pallas_call(
        _matmul_kernel,
        out_shape=jax.ShapeDtypeStruct((Mp, Np), x.dtype),
        grid=(Mp // tm, Np // tn, Kp // tk),
        in_specs=[
            pl.BlockSpec((tm, tk), lambda i, j, k: (i, k)),
            pl.BlockSpec((tk, tn), lambda i, j, k: (k, j)),
        ],
        out_specs=pl.BlockSpec((tm, tn), lambda i, j, k: (i, j)),
        scratch_shapes=[pltpu.VMEM((tm, tn), jnp.float32)],
        compiler_params=pltpu.CompilerParams(
            dimension_semantics=("parallel", "parallel", "arbitrary"),
            vmem_limit_bytes=32 * 1024 * 1024,
        ),
    )(x, w_kn)
    if (Mp, Np) != (M, out_dim):
        out = out[:M, :out_dim]
    return out


# -------------------- fused RMSNorm + matmul (kv_b_proj) --------------------

def _rmsnorm_matmul_kernel(x_ref, g_ref, w_ref, o_ref, xn_ref, *, eps, norm_k):
    # Grid = (M tiles, N tiles); K (kv_lora_rank) is untiled.  The normalized
    # activations are computed once per row tile (j == 0) and reused from
    # VMEM scratch for every N tile -> no HBM round trip of ckv_norm.
    @pl.when(pl.program_id(1) == 0)
    def _norm():
        x = x_ref[...].astype(jnp.float32)
        xs = x[:, :norm_k]
        var = jnp.sum(xs * xs, axis=-1, keepdims=True) / norm_k
        xn_ref[...] = (g_ref[...].astype(jnp.float32)
                       * (x * lax.rsqrt(var + eps))).astype(xn_ref.dtype)

    o_ref[...] = jnp.dot(xn_ref[...], w_ref[...],
                         preferred_element_type=jnp.float32).astype(o_ref.dtype)


def rmsnorm_linear(x, gamma, w_kn, *, norm_k, out_dim=None, eps=1e-6,
                   tm=256, tn=512):
    """out = rmsnorm(x[:, :norm_k], gamma) @ w_kn.

    `x` may be wider than norm_k (e.g. the raw kv_a_proj output containing the
    rope columns); when norm_k is lane-aligned the first norm_k columns are
    read directly via BlockSpec with no HBM slice copy.
    """
    M, Kx = x.shape
    Kp, Np = w_kn.shape
    out_dim = Np if out_dim is None else out_dim
    assert norm_k <= Kx and Kp % 128 == 0 and Np % 128 == 0

    if norm_k % 128 == 0 and Kp == norm_k:
        k_block = norm_k
        x_in = x
        g_in = gamma.reshape(1, norm_k)
    else:  # fallback: slice + pad in the wrapper (not hit by DeepSeek-V2 dims)
        k_block = Kp
        x_in = jnp.pad(x[:, :norm_k], ((0, 0), (0, Kp - norm_k)))
        g_in = jnp.pad(gamma.reshape(1, norm_k), ((0, 0), (0, Kp - norm_k)))

    tm = min(tm, _round_up(M, 8))
    tn = _pick_tile(Np, tn, 128)
    Mp = _round_up(M, tm)
    if Mp != M:
        x_in = jnp.pad(x_in, ((0, Mp - M), (0, 0)))

    out = pl.pallas_call(
        functools.partial(_rmsnorm_matmul_kernel, eps=eps, norm_k=norm_k),
        out_shape=jax.ShapeDtypeStruct((Mp, Np), x.dtype),
        grid=(Mp // tm, Np // tn),
        in_specs=[
            pl.BlockSpec((tm, k_block), lambda i, j: (i, 0)),
            pl.BlockSpec((1, k_block), lambda i, j: (0, 0)),
            pl.BlockSpec((k_block, tn), lambda i, j: (0, j)),
        ],
        out_specs=pl.BlockSpec((tm, tn), lambda i, j: (i, j)),
        scratch_shapes=[pltpu.VMEM((tm, k_block), x.dtype)],
        compiler_params=pltpu.CompilerParams(
            dimension_semantics=("parallel", "arbitrary"),
            vmem_limit_bytes=32 * 1024 * 1024,
        ),
    )(x_in, g_in, w_kn)
    if (Mp, Np) != (M, out_dim):
        out = out[:M, :out_dim]
    return out


# --------------------- flash attention (online softmax) ---------------------

_MASK_VALUE = -1e30


def _flash_attn_kernel(q_ref, kv_ref, kpe_ref, o_ref, m_sc, l_sc, acc_sc,
                       *, scale, nope, tq, tkv):
    qi = pl.program_id(2)
    ki = pl.program_id(3)
    q_start = qi * tq
    k_start = ki * tkv

    @pl.when(ki == 0)
    def _init():
        m_sc[...] = jnp.full_like(m_sc, _MASK_VALUE)
        l_sc[...] = jnp.zeros_like(l_sc)
        acc_sc[...] = jnp.zeros_like(acc_sc)

    def update(masked):
        q = q_ref[...]                       # (tq, nope+rope)
        kn = kv_ref[:, :nope]                # (tkv, nope)  -- in-VMEM slice, aligned
        v = kv_ref[:, nope:]                 # (tkv, dv)
        kp = kpe_ref[...]                    # (tkv, rope)  -- shared across heads
        # Single fused score matmul of depth nope+rope (one MXU issue stream).
        k_full = jnp.concatenate([kn, kp], axis=-1)
        s = lax.dot_general(q, k_full, (((1,), (1,)), ((), ())),
                            preferred_element_type=jnp.float32) * scale
        if masked:
            q_pos = q_start + lax.broadcasted_iota(jnp.int32, (tq, tkv), 0)
            k_pos = k_start + lax.broadcasted_iota(jnp.int32, (tq, tkv), 1)
            s = jnp.where(q_pos >= k_pos, s, _MASK_VALUE)

        m_prev = m_sc[...]
        m_new = jnp.maximum(m_prev, jnp.max(s, axis=-1, keepdims=True))
        alpha = jnp.exp(m_prev - m_new)
        p = jnp.exp(s - m_new)
        l_sc[...] = alpha * l_sc[...] + jnp.sum(p, axis=-1, keepdims=True)
        acc_sc[...] = alpha * acc_sc[...] + jnp.dot(
            p.astype(v.dtype), v, preferred_element_type=jnp.float32)
        m_sc[...] = m_new

    # KV tile fully below the causal diagonal: no mask work at all.
    @pl.when(k_start + tkv - 1 <= q_start)
    def _unmasked():
        update(masked=False)

    # KV tile straddles the diagonal: apply the in-kernel causal mask.
    @pl.when(jnp.logical_and(k_start + tkv - 1 > q_start,
                             k_start <= q_start + tq - 1))
    def _masked():
        update(masked=True)

    # (tiles strictly above the diagonal are skipped; their DMA is also
    #  suppressed by the clamped index_maps in flash_attention below)

    @pl.when(ki == pl.num_programs(3) - 1)
    def _finalize():
        inv_l = pl.reciprocal(l_sc[...], approx=True)   # EUP slot, not VPU divide
        o_ref[...] = (acc_sc[...] * inv_l).astype(o_ref.dtype)


def _flash_tiles(S):
    if S <= 128:
        t = _round_up(max(S, 1), 8)
        return t, t
    try:
        kind = jax.devices()[0].device_kind.lower()
    except Exception:  # pragma: no cover
        kind = ""
    big_mxu = ("v6" in kind) or ("v7" in kind)
    return (256, 128) if big_mxu else (128, 128)


def flash_attention(q, kv, k_pe, scale, *, nope, dv):
    """q: (B, nh, S, nope+rope); kv: (B, S, nh*(nope+dv)) = per-head [k_nope|v];
    k_pe: (B, S, rope) shared across heads.  Returns (B, S, nh*dv)."""
    B, nh, S, qhd = q.shape
    rope = qhd - nope
    npdv = nope + dv
    assert kv.shape == (B, S, nh * npdv)
    assert (npdv % 128 == 0 and dv % 128 == 0) or nh == 1, (
        "per-head [k_nope|v] and v_head_dim must be lane-aligned (true for DeepSeek-V2)")

    tq, tkv = _flash_tiles(S)
    Sp = _round_up(S, tq)            # tq is a multiple of tkv
    if Sp != S:
        q = jnp.pad(q, ((0, 0), (0, 0), (0, Sp - S), (0, 0)))
        kv = jnp.pad(kv, ((0, 0), (0, Sp - S), (0, 0)))
        k_pe = jnp.pad(k_pe, ((0, 0), (0, Sp - S), (0, 0)))

    # Clamp the KV block index above the causal diagonal: Pallas sees a
    # repeated block index and skips the re-DMA (compute is guarded in-kernel).
    def _kclamp(qi, ki):
        return jnp.minimum(ki, (qi * tq + tq - 1) // tkv)

    out = pl.pallas_call(
        functools.partial(_flash_attn_kernel, scale=scale, nope=nope,
                          tq=tq, tkv=tkv),
        out_shape=jax.ShapeDtypeStruct((B, Sp, nh * dv), q.dtype),
        grid=(B, nh, Sp // tq, Sp // tkv),
        in_specs=[
            pl.BlockSpec((None, None, tq, qhd),
                         lambda b, h, qi, ki: (b, h, qi, 0)),
            pl.BlockSpec((None, tkv, npdv),
                         lambda b, h, qi, ki: (b, _kclamp(qi, ki), h)),
            pl.BlockSpec((None, tkv, rope),
                         lambda b, h, qi, ki: (b, _kclamp(qi, ki), 0)),
        ],
        out_specs=pl.BlockSpec((None, tq, dv),
                               lambda b, h, qi, ki: (b, qi, h)),
        scratch_shapes=[
            pltpu.VMEM((tq, 1), jnp.float32),    # running max
            pltpu.VMEM((tq, 1), jnp.float32),    # running denom
            pltpu.VMEM((tq, dv), jnp.float32),   # running numerator
        ],
        compiler_params=pltpu.CompilerParams(
            dimension_semantics=("parallel", "parallel", "parallel", "arbitrary"),
            vmem_limit_bytes=32 * 1024 * 1024,
        ),
    )(q, kv, k_pe)
    return out[:, :S] if Sp != S else out


# -------------------------- RoPE glue (plain JAX) ---------------------------

def _rotate_half(x):
    h = x.shape[-1] // 2
    return jnp.concatenate([-x[..., h:], x[..., :h]], axis=-1)


def rotary_cos_sin(seq_len, dim, base=10000.0):
    inv_freq = 1.0 / (base ** (jnp.arange(0, dim, 2, dtype=jnp.float32) / dim))
    t = jnp.arange(seq_len, dtype=jnp.float32)
    freqs = jnp.outer(t, inv_freq)
    emb = jnp.concatenate([freqs, freqs], axis=-1)
    return jnp.cos(emb), jnp.sin(emb)


# ----------------------------- parameter prep -------------------------------

def _rope_fold_perm(d):
    # torch interleave permute: out[j] = in[2j] (j<d/2), in[2(j-d/2)+1] (j>=d/2)
    return np.concatenate([np.arange(0, d, 2), np.arange(1, d, 2)])


def make_kernel_params(params_pt, cfg):
    """One-time conversion: transpose to (in, out), fold the RoPE interleave
    permutation into q_proj / kv_a_proj columns, pad to 128-multiples."""
    nh = cfg["num_heads"]
    nope = cfg["qk_nope_head_dim"]
    rope = cfg["qk_rope_head_dim"]
    klr = cfg["kv_lora_rank"]
    qhd = nope + rope
    perm_r = _rope_fold_perm(rope)

    wq = jnp.asarray(params_pt["q_proj"]).T              # (H, nh*qhd)
    cols = np.arange(nh * qhd)
    for h in range(nh):
        base = h * qhd + nope
        cols[base:base + rope] = base + perm_r
    wq = wq[:, cols]

    wkva = jnp.asarray(params_pt["kv_a_proj"]).T          # (H, klr+rope)
    cols = np.arange(klr + rope)
    cols[klr:] = klr + perm_r
    wkva = wkva[:, cols]

    wkvb = jnp.asarray(params_pt["kv_b_proj"]).T          # (klr, nh*(nope+dv))
    wo = jnp.asarray(params_pt["o_proj"]).T               # (nh*dv, H)

    return {
        "q_proj": _pad2d(wq),
        "kv_a_proj": _pad2d(wkva),
        "kv_b_proj": _pad2d(wkvb),
        "o_proj": _pad2d(wo),
        "kv_a_layernorm": jnp.asarray(params_pt["kv_a_layernorm"]),
    }


# ----------------------------- module forward -------------------------------

def deepseek_v2_attention(params, cfg, hidden_states, position_ids):
    # TODO(synk): only the pure causal mask is supported (generated in-kernel);
    # arbitrary/padding attention_mask tensors are not handled.
    B, S, H = hidden_states.shape
    nh = cfg["num_heads"]
    nope = cfg["qk_nope_head_dim"]
    rope = cfg["qk_rope_head_dim"]
    dv = cfg["v_head_dim"]
    klr = cfg["kv_lora_rank"]
    qhd = nope + rope
    scale = qhd ** (-0.5)          # rope_scaling is None -> no mscale correction

    x2d = hidden_states.reshape(B * S, H)

    # q_lora_rank is None -> plain q_proj (rope cols already interleave-permuted)
    q2d = linear(x2d, params["q_proj"], out_dim=nh * qhd)         # (B*S, nh*qhd)
    ckv_full = linear(x2d, params["kv_a_proj"], out_dim=klr + rope)

    # kv_a_layernorm fused into kv_b_proj; reads the compressed-kv columns
    # straight out of ckv_full via BlockSpec (no HBM slice copy).
    kv2d = rmsnorm_linear(ckv_full, params["kv_a_layernorm"], params["kv_b_proj"],
                          norm_k=klr, out_dim=nh * (nope + dv))
    kv = kv2d.reshape(B, S, nh * (nope + dv))    # per-head [k_nope | v], no transpose

    cos, sin = rotary_cos_sin(S, rope, base=cfg["rope_theta"])
    cos = cos[position_ids]                      # (B, S, rope)
    sin = sin[position_ids]

    # q RoPE applied in (B, S, nh, qhd) layout (permute already folded in weights)
    q4 = q2d.reshape(B, S, nh, qhd)
    q_pe = q4[..., nope:]
    q_pe = q_pe * cos[:, :, None, :] + _rotate_half(q_pe) * sin[:, :, None, :]
    q4 = jnp.concatenate([q4[..., :nope], q_pe], axis=-1)
    q = q4.transpose(0, 2, 1, 3)                 # (B, nh, S, qhd)

    # shared single-head k_pe: stays (B, S, rope), never broadcast to heads
    k_pe = ckv_full[:, klr:].reshape(B, S, rope)
    k_pe = k_pe * cos + _rotate_half(k_pe) * sin

    # TODO(synk): the pseudo-quantized KV branch (pseudo_quantize_tensor ->
    # kv_b_proj -> key_states_q / value_states_q) only feeds
    # past_key_value.update(); with past_key_value=None it has no effect on
    # the returned attn_output and is omitted.  Attention dropout is identity
    # in eval mode and also omitted.

    attn = flash_attention(q, kv, k_pe, scale, nope=nope, dv=dv)  # (B, S, nh*dv)
    out = linear(attn.reshape(B * S, nh * dv), params["o_proj"], out_dim=H)
    return out.reshape(B, S, H)


# --------------------------- pure-JAX reference -----------------------------

def _interleave_permute(x):
    # torch: view(..., d//2, 2).transpose(-1, -2).reshape(..., d)
    return jnp.concatenate([x[..., 0::2], x[..., 1::2]], axis=-1)


def _ref_apply_rotary_pos_emb(q, k, cos, sin, position_ids):
    cos = cos[position_ids][:, None, :, :]
    sin = sin[position_ids][:, None, :, :]
    q = _interleave_permute(q)
    k = _interleave_permute(k)
    q_embed = q * cos + _rotate_half(q) * sin
    k_embed = k * cos + _rotate_half(k) * sin
    return q_embed, k_embed


def _ref_forward(params_pt, cfg, hidden_states, attention_mask, position_ids):
    B, S, H = hidden_states.shape
    nh = cfg["num_heads"]
    nope = cfg["qk_nope_head_dim"]
    rope = cfg["qk_rope_head_dim"]
    dv = cfg["v_head_dim"]
    klr = cfg["kv_lora_rank"]
    qhd = nope + rope
    scale = qhd ** (-0.5)

    x2d = hidden_states.reshape(B * S, H)
    q = (x2d @ params_pt["q_proj"].T).reshape(B, S, nh, qhd).transpose(0, 2, 1, 3)
    q_nope, q_pe = q[..., :nope], q[..., nope:]
    ckv_full = x2d @ params_pt["kv_a_proj"].T
    ckv, k_pe = ckv_full[:, :klr], ckv_full[:, klr:]
    k_pe = k_pe.reshape(B, S, 1, rope).transpose(0, 2, 1, 3)
    var = jnp.mean(ckv.astype(jnp.float32) ** 2, axis=-1, keepdims=True)
    ckv_n = params_pt["kv_a_layernorm"] * (ckv * lax.rsqrt(var + 1e-6))
    kv = (ckv_n @ params_pt["kv_b_proj"].T).reshape(B, S, nh, nope + dv)
    kv = kv.transpose(0, 2, 1, 3)
    k_nope, v = kv[..., :nope], kv[..., nope:]
    cos, sin = rotary_cos_sin(S, rope, base=cfg["rope_theta"])
    q_pe, k_pe = _ref_apply_rotary_pos_emb(q_pe, k_pe, cos, sin, position_ids)
    query = jnp.concatenate([q_nope, q_pe], axis=-1)
    key = jnp.concatenate([k_nope, jnp.broadcast_to(k_pe, (B, nh, S, rope))], axis=-1)
    w = jnp.einsum("bhqd,bhkd->bhqk", query, key) * scale + attention_mask
    p = jax.nn.softmax(w.astype(jnp.float32), axis=-1)
    attn = jnp.einsum("bhqk,bhkd->bhqd", p, v)
    attn = attn.transpose(0, 2, 1, 3).reshape(B * S, nh * dv)
    return (attn @ params_pt["o_proj"].T).reshape(B, S, H)


# ---------------------------------- main -------------------------------------

if __name__ == "__main__":
    # Small batch/seq but DeepSeek-V2's structural head dims (128/64/128) so the
    # lane-aligned layout optimizations are actually exercised.
    B, S, H = 2, 8, 256
    cfg = dict(
        num_heads=2,
        qk_nope_head_dim=128,
        qk_rope_head_dim=64,
        v_head_dim=128,
        kv_lora_rank=128,
        rope_theta=10000.0,
    )
    nh = cfg["num_heads"]
    nope = cfg["qk_nope_head_dim"]
    rope = cfg["qk_rope_head_dim"]
    dv = cfg["v_head_dim"]
    klr = cfg["kv_lora_rank"]
    qhd = nope + rope

    key = jax.random.PRNGKey(0)
    k0, k1, k2, k3, k4, k5 = jax.random.split(key, 6)
    params_pt = {   # PyTorch nn.Linear layout (out_features, in_features)
        "q_proj": 0.05 * jax.random.normal(k0, (nh * qhd, H), jnp.float32),
        "kv_a_proj": 0.05 * jax.random.normal(k1, (klr + rope, H), jnp.float32),
        "kv_a_layernorm": 1.0 + 0.1 * jax.random.normal(k5, (klr,), jnp.float32),
        "kv_b_proj": 0.05 * jax.random.normal(k2, (nh * (nope + dv), klr), jnp.float32),
        "o_proj": 0.05 * jax.random.normal(k3, (H, nh * dv), jnp.float32),
    }
    params = make_kernel_params(params_pt, cfg)   # one-time conversion / padding

    hidden_states = jax.random.normal(k4, (B, S, H), jnp.float32)
    position_ids = jnp.broadcast_to(jnp.arange(S, dtype=jnp.int32), (B, S))

    out = deepseek_v2_attention(params, cfg, hidden_states, position_ids)
    out = jax.block_until_ready(out)

    causal = jnp.where(jnp.tril(jnp.ones((S, S), dtype=bool)), 0.0, -1e9)
    attention_mask = jnp.broadcast_to(causal.astype(jnp.float32), (B, 1, S, S))
    ref = _ref_forward(params_pt, cfg, hidden_states, attention_mask, position_ids)

    assert out.shape == (B, S, H)
    # tolerance loosened slightly for the approx (EUP) softmax reciprocal
    assert jnp.allclose(out, ref, atol=2e-3, rtol=2e-3), float(
        jnp.max(jnp.abs(out - ref))
    )
    print("KERNEL_OK")
</pallas_src>

<mosaic_0001>
module attributes {stable_mosaic.version = 11 : i64} {
  func.func @_matmul_kernel(%arg0: i32, %arg1: i32, %arg2: i32, %arg3: memref<16x256xf32, #tpu.memory_space<vmem>>, %arg4: memref<256x384xf32, #tpu.memory_space<vmem>>, %arg5: memref<16x384xf32, #tpu.memory_space<vmem>>, %arg6: memref<16x384xf32, #tpu.memory_space<vmem>>) attributes {dimension_semantics = [#tpu.dimension_semantics<parallel>, #tpu.dimension_semantics<parallel>, #tpu.dimension_semantics<arbitrary>], iteration_bounds = array<i64: 1, 1, 1>, scalar_prefetch = 0 : i64, scratch_operands = 1 : i64, tpu.core_type = #tpu.core_type<tc>, window_params = [{transform_indices = @transform_0, window_bounds = array<i64: 16, 256>}, {transform_indices = @transform_1, window_bounds = array<i64: 256, 384>}, {transform_indices = @transform_2, window_bounds = array<i64: 16, 384>}]} {
    %c0_i32 = arith.constant 0 : i32
    %0 = arith.cmpi eq, %arg2, %c0_i32 : i32
    %1 = arith.extui %0 : i1 to i32
    %c0_i32_0 = arith.constant 0 : i32
    %2 = arith.cmpi ne, %1, %c0_i32_0 : i32
    scf.if %2 {
      %cst_10 = arith.constant 0.000000e+00 : f32
      %12 = vector.broadcast %cst_10 : f32 to vector<16x384xf32>
      %c0_11 = arith.constant 0 : index
      %c0_12 = arith.constant 0 : index
      %13 = vector.load %arg6[%c0_11, %c0_12] : memref<16x384xf32, #tpu.memory_space<vmem>>, vector<16x384xf32>
      tpu.vector_store %arg6[%c0_11, %c0_12], %12 {strides = array<i32>} : memref<16x384xf32, #tpu.memory_space<vmem>>, vector<16x384xf32>,
    } else {
    }
    %c0 = arith.constant 0 : index
    %c0_1 = arith.constant 0 : index
    %3 = vector.load %arg6[%c0, %c0_1] : memref<16x384xf32, #tpu.memory_space<vmem>>, vector<16x384xf32>
    %c0_2 = arith.constant 0 : index
    %c0_3 = arith.constant 0 : index
    %4 = vector.load %arg3[%c0_2, %c0_3] : memref<16x256xf32, #tpu.memory_space<vmem>>, vector<16x256xf32>
    %c0_4 = arith.constant 0 : index
    %c0_5 = arith.constant 0 : index
    %5 = vector.load %arg4[%c0_4, %c0_5] : memref<256x384xf32, #tpu.memory_space<vmem>>, vector<256x384xf32>
    %cst = arith.constant dense<0.000000e+00> : vector<16x384xf32>
    %6 = tpu.matmul %4, %5, %cst {dimension_numbers = #tpu.dot_dimension_numbers<[1], [0], [0], [1], [0, 0, 1, 1], [], []>} : vector<16x256xf32>, vector<256x384xf32>, vector<16x384xf32> -> vector<16x384xf32>
    %7 = arith.addf %3, %6 : vector<16x384xf32>
    %c0_6 = arith.constant 0 : index
    %c0_7 = arith.constant 0 : index
    %8 = vector.load %arg6[%c0_6, %c0_7] : memref<16x384xf32, #tpu.memory_space<vmem>>, vector<16x384xf32>
    tpu.vector_store %arg6[%c0_6, %c0_7], %7 {strides = array<i32>} : memref<16x384xf32, #tpu.memory_space<vmem>>, vector<16x384xf32>,
    %c0_i32_8 = arith.constant 0 : i32
    %9 = arith.cmpi eq, %arg2, %c0_i32_8 : i32
    %10 = arith.extui %9 : i1 to i32
    %c0_i32_9 = arith.constant 0 : i32
    %11 = arith.cmpi ne, %10, %c0_i32_9 : i32
    scf.if %11 {
      %c0_10 = arith.constant 0 : index
      %c0_11 = arith.constant 0 : index
      %12 = vector.load %arg6[%c0_10, %c0_11] : memref<16x384xf32, #tpu.memory_space<vmem>>, vector<16x384xf32>
      %c0_12 = arith.constant 0 : index
      %c0_13 = arith.constant 0 : index
      %13 = vector.load %arg5[%c0_12, %c0_13] : memref<16x384xf32, #tpu.memory_space<vmem>>, vector<16x384xf32>
      tpu.vector_store %arg5[%c0_12, %c0_13], %12 {strides = array<i32>} : memref<16x384xf32, #tpu.memory_space<vmem>>, vector<16x384xf32>,
    } else {
    }
    return
  }
  func.func @transform_0(%arg0: i32, %arg1: i32, %arg2: i32) -> (i32, i32) {
    %c0_i32 = arith.constant 0 : i32
    return %arg0, %arg2 : i32, i32
  }
  func.func @transform_1(%arg0: i32, %arg1: i32, %arg2: i32) -> (i32, i32) {
    %c0_i32 = arith.constant 0 : i32
    return %arg2, %arg1 : i32, i32
  }
  func.func @transform_2(%arg0: i32, %arg1: i32, %arg2: i32) -> (i32, i32) {
    %c0_i32 = arith.constant 0 : i32
    return %arg0, %arg1 : i32, i32
  }
}

</mosaic_0001>

<llo_original>
// kernel: tpu_custom_call.1
$region0: #{tpu_custom_call.1}
  #allocation0 [shape = 'u32[]', space=smem, size = 0x4, offset = 0x4, fixed_abs, tag = 'smem constant byte address 0x4 - core index']
  #allocation1 [shape = 'u32[144,128]{1,0:T(1,128)}', space=vmem, size = 0x12000, scoped, tag = 'internal scratch']
  #allocation2 [shape = 'f32[16,384]{1,0:T(8,128)}', space=vmem, size = 0x6000, scoped, tag = 'scratch operand']
  %s0 = inlined_call_operand.hbm [shape: f32[16,256], index: 0, kind: input, shape index: {}]
  %s1 = inlined_call_operand.hbm [shape: f32[256,384], index: 1, kind: input, shape index: {}]
  %s2 = inlined_call_operand.hbm [shape: f32[16,384], index: 2, kind: output, shape index: {}]
  %s3 = sld [smem:[#allocation0]]
  $region34: #{tpu_custom_call.1} parent=0
    _
  %s5 = ssub.s32 1, %s3
  %s6 = scalar_select 0, %s5, %s3
  $region1: #{tpu_custom_call.1} parent=0
    #allocation3 [shape = 'u8[16384]{0}', space=vmem, size = 0x4000, scoped, tag = 'input window, operand 0, single buffered']
    #allocation4 [shape = 's32[1]{0}', space=sflag, size = 0x4, scoped, tag = 'scoped memory for tpu_custom_call.1']
    #allocation5 [shape = 's32[1]{0}', space=sflag, size = 0x4, scoped, tag = 'scoped memory for tpu_custom_call.1']
    #allocation6 [shape = 'u8[393216]{0}', space=vmem, size = 0x60000, scoped, tag = 'input window, operand 1, single buffered']
    #allocation7 [shape = 's32[1]{0}', space=sflag, size = 0x4, scoped, tag = 'scoped memory for tpu_custom_call.1']
    #allocation8 [shape = 'u8[24576]{0}', space=vmem, size = 0x6000, scoped, tag = 'output window, operand 0, single buffered']
    %7 = vsyncpa [#allocation4], 0
    %8 = vsyncpa [#allocation7], 0
    %9 = vsyncpa [#allocation5], 0
    // Predicated region
    $region2: #{tpu_custom_call.1} parent=1 // pred_check
      _
    $region3: #{tpu_custom_call.1} parent=1 // pred_check_branch
      %11 = sbr.rel (0) target = $region5
    $region4: #{tpu_custom_call.1} parent=1 // pred_region
      %s13 = ssub.s32 512, 512
      %14 = vsyncadd [#allocation4], %s13
      %s15 = sshll.u32 [#allocation3], 4
      %s16 = int_to_ptr.vmem [resolvable:$true] %s15
      %21 = dma.hbm_to_vmem [thread:$0]  %s0, 512, %s16, [#allocation4], 256, 256, 16
    $region5: #{tpu_custom_call.1} parent=1 // pred_fallthru
      _
    // Predicated region
    $region6: #{tpu_custom_call.1} parent=1 // pred_check
      _
    $region7: #{tpu_custom_call.1} parent=1 // pred_check_branch
      %23 = sbr.rel (0) target = $region9
    $region8: #{tpu_custom_call.1} parent=1 // pred_region
      %s25 = ssub.s32 12288, 12288
      %26 = vsyncadd [#allocation7], %s25
      %s27 = sshll.u32 [#allocation6], 4
      %s28 = int_to_ptr.vmem [resolvable:$true] %s27
      %33 = dma.hbm_to_vmem [thread:$0]  %s1, 12288, %s28, [#allocation7], 384, 384, 24
    $region9: #{tpu_custom_call.1} parent=1 // pred_fallthru
      _
    // Predicated region
    $region10: #{tpu_custom_call.1} parent=1 // pred_check
      _
    $region11: #{tpu_custom_call.1} parent=1 // pred_check_branch
      %35 = sbr.rel (0) target = $region13
    $region12: #{tpu_custom_call.1} parent=1 // pred_region
      %36 = dma.done [#allocation4], 512
    $region13: #{tpu_custom_call.1} parent=1 // pred_fallthru
      _
    // Predicated region
    $region14: #{tpu_custom_call.1} parent=1 // pred_check
      _
    $region15: #{tpu_custom_call.1} parent=1 // pred_check_branch
      %38 = sbr.rel (0) target = $region17
    $region16: #{tpu_custom_call.1} parent=1 // pred_region
      %39 = dma.done [#allocation7], 12288
    $region17: #{tpu_custom_call.1} parent=1 // pred_fallthru
      _
    %p40 = scmp.eq.s32.totalorder 0, 0
    // Predicated region
    $region18: #{tpu_custom_call.1} parent=1 // pred_check
      %p41 = pneg %p40
    $region19: #{tpu_custom_call.1} parent=1 // pred_check_branch
      %43 = sbr.rel (%p41) target = $region21
    $region20: #{tpu_custom_call.1} parent=1 // pred_region
      %44 = vst [vmem:[#allocation2] sm:$0xff] 0.0
      %45 = vst [vmem:[#allocation2 + $0x8] sm:$0xff] 0.0
      %46 = vst [vmem:[#allocation2 + $0x10] sm:$0xff] 0.0
      %47 = vst [vmem:[#allocation2 + $0x18] sm:$0xff] 0.0
      %48 = vst [vmem:[#allocation2 + $0x20] sm:$0xff] 0.0
      %49 = vst [vmem:[#allocation2 + $0x28] sm:$0xff] 0.0
    $region21: #{tpu_custom_call.1} parent=1 // pred_fallthru
      _
    %v50 = vld [vmem:[#allocation2] sm:$0xff]
    %v51 = vld [vmem:[#allocation2 + $0x8] sm:$0xff]
    %v52 = vld [vmem:[#allocation2 + $0x10] sm:$0xff]
    %v53 = vld [vmem:[#allocation2 + $0x18] sm:$0xff]
    %v54 = vld [vmem:[#allocation2 + $0x20] sm:$0xff]
    %v55 = vld [vmem:[#allocation2 + $0x28] sm:$0xff]
    %v56 = vld [vmem:[#allocation3] sm:$0xff]
    %v57 = vld [vmem:[#allocation3 + $0x8] sm:$0xff]
    %v58 = vld [vmem:[#allocation3 + $0x10] sm:$0xff]
    %v59 = vld [vmem:[#allocation3 + $0x18] sm:$0xff]
    %v60 = vld [vmem:[#allocation6] sm:$0xff]
    %v61 = vld [vmem:[#allocation6 + $0x8] sm:$0xff]
    %v62 = vld [vmem:[#allocation6 + $0x10] sm:$0xff]
    %v63 = vld [vmem:[#allocation6 + $0x18] sm:$0xff]
    %v64 = vld [vmem:[#allocation6 + $0x20] sm:$0xff]
    %v65 = vld [vmem:[#allocation6 + $0x28] sm:$0xff]
    %v66 = vld [vmem:[#allocation6 + $0x30] sm:$0xff]
    %v67 = vld [vmem:[#allocation6 + $0x38] sm:$0xff]
    %v68 = vld [vmem:[#allocation6 + $0x40] sm:$0xff]
    %v69 = vld [vmem:[#allocation6 + $0x48] sm:$0xff]
    %v70 = vld [vmem:[#allocation6 + $0x50] sm:$0xff]
    %v71 = vld [vmem:[#allocation6 + $0x58] sm:$0xff]
    %v72 = vld [vmem:[#allocation6 + $0x60] sm:$0xff]
    %v73 = vld [vmem:[#allocation6 + $0x68] sm:$0xff]
    %v74 = vld [vmem:[#allocation6 + $0x70] sm:$0xff]
    %v75 = vld [vmem:[#allocation6 + $0x78] sm:$0xff]
    %v76 = vld [vmem:[#allocation6 + $0x80] sm:$0xff]
    %v77 = vld [vmem:[#allocation6 + $0x88] sm:$0xff]
    %v78 = vld [vmem:[#allocation6 + $0x90] sm:$0xff]
    %v79 = vld [vmem:[#allocation6 + $0x98] sm:$0xff]
    %v80 = vld [vmem:[#allocation6 + $0xa0] sm:$0xff]
    %v81 = vld [vmem:[#allocation6 + $0xa8] sm:$0xff]
    %v82 = vld [vmem:[#allocation6 + $0xb0] sm:$0xff]
    %v83 = vld [vmem:[#allocation6 + $0xb8] sm:$0xff]
    %v84 = vld [vmem:[#allocation6 + $0xc0] sm:$0xff]
    %v85 = vld [vmem:[#allocation6 + $0xc8] sm:$0xff]
    %v86 = vld [vmem:[#allocation6 + $0xd0] sm:$0xff]
    %v87 = vld [vmem:[#allocation6 + $0xd8] sm:$0xff]
    %v88 = vld [vmem:[#allocation6 + $0xe0] sm:$0xff]
    %v89 = vld [vmem:[#allocation6 + $0xe8] sm:$0xff]
    %v90 = vld [vmem:[#allocation6 + $0xf0] sm:$0xff]
    %v91 = vld [vmem:[#allocation6 + $0xf8] sm:$0xff]
    %v92 = vld [vmem:[#allocation6 + $0x100] sm:$0xff]
    %v93 = vld [vmem:[#allocation6 + $0x108] sm:$0xff]
    %v94 = vld [vmem:[#allocation6 + $0x110] sm:$0xff]
    %v95 = vld [vmem:[#allocation6 + $0x118] sm:$0xff]
    %v96 = vld [vmem:[#allocation6 + $0x120] sm:$0xff]
    %v97 = vld [vmem:[#allocation6 + $0x128] sm:$0xff]
    %v98 = vld [vmem:[#allocation6 + $0x130] sm:$0xff]
    %v99 = vld [vmem:[#allocation6 + $0x138] sm:$0xff]
    %v100 = vld [vmem:[#allocation6 + $0x140] sm:$0xff]
    %v101 = vld [vmem:[#allocation6 + $0x148] sm:$0xff]
    %v102 = vld [vmem:[#allocation6 + $0x150] sm:$0xff]
    %v103 = vld [vmem:[#allocation6 + $0x158] sm:$0xff]
    %v104 = vld [vmem:[#allocation6 + $0x160] sm:$0xff]
    %v105 = vld [vmem:[#allocation6 + $0x168] sm:$0xff]
    %v106 = vld [vmem:[#allocation6 + $0x170] sm:$0xff]
    %v107 = vld [vmem:[#allocation6 + $0x178] sm:$0xff]
    %v108 = vld [vmem:[#allocation6 + $0x180] sm:$0xff]
    %v109 = vld [vmem:[#allocation6 + $0x188] sm:$0xff]
    %v110 = vld [vmem:[#allocation6 + $0x190] sm:$0xff]
    %v111 = vld [vmem:[#allocation6 + $0x198] sm:$0xff]
    %v112 = vld [vmem:[#allocation6 + $0x1a0] sm:$0xff]
    %v113 = vld [vmem:[#allocation6 + $0x1a8] sm:$0xff]
    %v114 = vld [vmem:[#allocation6 + $0x1b0] sm:$0xff]
    %v115 = vld [vmem:[#allocation6 + $0x1b8] sm:$0xff]
    %v116 = vld [vmem:[#allocation6 + $0x1c0] sm:$0xff]
    %v117 = vld [vmem:[#allocation6 + $0x1c8] sm:$0xff]
    %v118 = vld [vmem:[#allocation6 + $0x1d0] sm:$0xff]
    %v119 = vld [vmem:[#allocation6 + $0x1d8] sm:$0xff]
    %v120 = vld [vmem:[#allocation6 + $0x1e0] sm:$0xff]
    %v121 = vld [vmem:[#allocation6 + $0x1e8] sm:$0xff]
    %v122 = vld [vmem:[#allocation6 + $0x1f0] sm:$0xff]
    %v123 = vld [vmem:[#allocation6 + $0x1f8] sm:$0xff]
    %v124 = vld [vmem:[#allocation6 + $0x200] sm:$0xff]
    %v125 = vld [vmem:[#allocation6 + $0x208] sm:$0xff]
    %v126 = vld [vmem:[#allocation6 + $0x210] sm:$0xff]
    %v127 = vld [vmem:[#allocation6 + $0x218] sm:$0xff]
    %v128 = vld [vmem:[#allocation6 + $0x220] sm:$0xff]
    %v129 = vld [vmem:[#allocation6 + $0x228] sm:$0xff]
    %v130 = vld [vmem:[#allocation6 + $0x230] sm:$0xff]
    %v131 = vld [vmem:[#allocation6 + $0x238] sm:$0xff]
    %v132 = vld [vmem:[#allocation6 + $0x240] sm:$0xff]
    %v133 = vld [vmem:[#allocation6 + $0x248] sm:$0xff]
    %v134 = vld [vmem:[#allocation6 + $0x250] sm:$0xff]
    %v135 = vld [vmem:[#allocation6 + $0x258] sm:$0xff]
    %v136 = vld [vmem:[#allocation6 + $0x260] sm:$0xff]
    %v137 = vld [vmem:[#allocation6 + $0x268] sm:$0xff]
    %v138 = vld [vmem:[#allocation6 + $0x270] sm:$0xff]
    %v139 = vld [vmem:[#allocation6 + $0x278] sm:$0xff]
    %v140 = vld [vmem:[#allocation6 + $0x280] sm:$0xff]
    %v141 = vld [vmem:[#allocation6 + $0x288] sm:$0xff]
    %v142 = vld [vmem:[#allocation6 + $0x290] sm:$0xff]
    %v143 = vld [vmem:[#allocation6 + $0x298] sm:$0xff]
    %v144 = vld [vmem:[#allocation6 + $0x2a0] sm:$0xff]
    %v145 = vld [vmem:[#allocation6 + $0x2a8] sm:$0xff]
    %v146 = vld [vmem:[#allocation6 + $0x2b0] sm:$0xff]
    %v147 = vld [vmem:[#allocation6 + $0x2b8] sm:$0xff]
    %v148 = vld [vmem:[#allocation6 + $0x2c0] sm:$0xff]
    %v149 = vld [vmem:[#allocation6 + $0x2c8] sm:$0xff]
    %v150 = vld [vmem:[#allocation6 + $0x2d0] sm:$0xff]
    %v151 = vld [vmem:[#allocation6 + $0x2d8] sm:$0xff]
    %v152 = vld [vmem:[#allocation6 + $0x2e0] sm:$0xff]
    %v153 = vld [vmem:[#allocation6 + $0x2e8] sm:$0xff]
    %v154 = vld [vmem:[#allocation6 + $0x2f0] sm:$0xff]
    %v155 = vld [vmem:[#allocation6 + $0x2f8] sm:$0xff]
    %156 = vmatprep.subr.mxu0 %v61
    %157 = vmatpush1.msra.mxu0 %v60
    %158 = vmatprep.subr.mxu0 %v64
    %159 = vmatpush1.msra.mxu0 %v63
    %160 = vmatprep.subr.mxu0 %v67
    %161 = vmatpush1.msra.mxu0 %v66
    %162 = vmatprep.subr.mxu0 %v70
    %163 = vmatpush1.msra.mxu0 %v69
    %164 = vmatprep.subr.mxu0 %v73
    %165 = vmatpush1.msra.mxu0 %v72
    %166 = vmatprep.subr.mxu0 %v76
    %167 = vmatpush1.msra.mxu0 %v75
    %168 = vmatprep.subr.mxu0 %v79
    %169 = vmatpush1.msra.mxu0 %v78
    %170 = vmatprep.subr.mxu0 %v82
    %171 = vmatpush1.msra.mxu0 %v81
    %172 = vmatprep.subr.mxu0 %v85
    %173 = vmatpush1.msra.mxu0 %v84
    %174 = vmatprep.subr.mxu0 %v88
    %175 = vmatpush1.msra.mxu0 %v87
    %176 = vmatprep.subr.mxu0 %v91
    %177 = vmatpush1.msra.mxu0 %v90
    %178 = vmatprep.subr.mxu0 %v94
    %179 = vmatpush1.msra.mxu0 %v93
    %180 = vmatprep.subr.mxu0 %v97
    %181 = vmatpush1.msra.mxu0 %v96
    %182 = vmatprep.subr.mxu0 %v100
    %183 = vmatpush1.msra.mxu0 %v99
    %184 = vmatprep.subr.mxu0 %v103
    %185 = vmatpush1.msra.mxu0 %v102
    %186 = vmatprep.subr.mxu0 %v106
    %187 = vmatpush1.msra.mxu0 %v105
    %188 = vmatprep.subr.mxu0 %v109
    %189 = vmatpush1.msra.mxu0 %v108
    %190 = vmatprep.subr.mxu0 %v112
    %191 = vmatpush1.msra.mxu0 %v111
    %192 = vmatprep.subr.mxu0 %v115
    %193 = vmatpush1.msra.mxu0 %v114
    %194 = vmatprep.subr.mxu0 %v118
    %195 = vmatpush1.msra.mxu0 %v117
    %196 = vmatprep.subr.mxu0 %v121
    %197 = vmatpush1.msra.mxu0 %v120
    %198 = vmatprep.subr.mxu0 %v124
    %199 = vmatpush1.msra.mxu0 %v123
    %200 = vmatprep.subr.mxu0 %v127
    %201 = vmatpush1.msra.mxu0 %v126
    %202 = vmatprep.subr.mxu0 %v130
    %203 = vmatpush1.msra.mxu0 %v129
    %204 = vmatprep.subr.mxu0 %v133
    %205 = vmatpush1.msra.mxu0 %v132
    %206 = vmatprep.subr.mxu0 %v136
    %207 = vmatpush1.msra.mxu0 %v135
    %208 = vmatprep.subr.mxu0 %v139
    %209 = vmatpush1.msra.mxu0 %v138
    %210 = vmatprep.subr.mxu0 %v142
    %211 = vmatpush1.msra.mxu0 %v141
    %212 = vmatprep.subr.mxu0 %v145
    %213 = vmatpush1.msra.mxu0 %v144
    %214 = vmatprep.subr.mxu0 %v148
    %215 = vmatpush1.msra.mxu0 %v147
    %216 = vmatprep.subr.mxu0 %v151
    %217 = vmatpush1.msra.mxu0 %v150
    %218 = vmatprep.subr.mxu0 %v154
    %219 = vmatpush1.msra.mxu0 %v153
    %220 = vmatprep.mubr.f32.mxu0 %v57
    %221 = vmatmul.mubr.f32.gmra.mrb[0].mxu0 %v56
    %v222 = vpop.f32.mrb[0].mxu0
    %v223 = vadd.f32 0.0, %v222
    %v224 = vpop.f32.mrb[0].mxu0
    %v225 = vadd.f32 0.0, %v224
    %226 = vmatprep.mubr.f32.mxu0 %v59
    %227 = vmatmul.mubr.f32.gmra.mrb[0].mxu0 %v58
    %v228 = vpop.f32.mrb[0].mxu0
    %v229 = vadd.f32 0.0, %v228
    %v230 = vpop.f32.mrb[0].mxu0
    %v231 = vadd.f32 0.0, %v230
    %232 = vdwg.mxu0
    %233 = vmatprep.subr.mxu0 0.0
    %234 = vmatpush1.msra.mxu0 %v62
    %235 = vmatprep.subr.mxu0 0.0
    %236 = vmatpush1.msra.mxu0 %v65
    %237 = vmatprep.subr.mxu0 0.0
    %238 = vmatpush1.msra.mxu0 %v68
    %239 = vmatprep.subr.mxu0 0.0
    %240 = vmatpush1.msra.mxu0 %v71
    %241 = vmatprep.subr.mxu0 0.0
    %242 = vmatpush1.msra.mxu0 %v74
    %243 = vmatprep.subr.mxu0 0.0
    %244 = vmatpush1.msra.mxu0 %v77
    %245 = vmatprep.subr.mxu0 0.0
    %246 = vmatpush1.msra.mxu0 %v80
    %247 = vmatprep.subr.mxu0 0.0
    %248 = vmatpush1.msra.mxu0 %v83
    %249 = vmatprep.subr.mxu0 0.0
    %250 = vmatpush1.msra.mxu0 %v86
    %251 = vmatprep.subr.mxu0 0.0
    %252 = vmatpush1.msra.mxu0 %v89
    %253 = vmatprep.subr.mxu0 0.0
    %254 = vmatpush1.msra.mxu0 %v92
    %255 = vmatprep.subr.mxu0 0.0
    %256 = vmatpush1.msra.mxu0 %v95
    %257 = vmatprep.subr.mxu0 0.0
    %258 = vmatpush1.msra.mxu0 %v98
    %259 = vmatprep.subr.mxu0 0.0
    %260 = vmatpush1.msra.mxu0 %v101
    %261 = vmatprep.subr.mxu0 0.0
    %262 = vmatpush1.msra.mxu0 %v104
    %263 = vmatprep.subr.mxu0 0.0
    %264 = vmatpush1.msra.mxu0 %v107
    %265 = vmatprep.subr.mxu0 0.0
    %266 = vmatpush1.msra.mxu0 %v110
    %267 = vmatprep.subr.mxu0 0.0
    %268 = vmatpush1.msra.mxu0 %v113
    %269 = vmatprep.subr.mxu0 0.0
    %270 = vmatpush1.msra.mxu0 %v116
    %271 = vmatprep.subr.mxu0 0.0
    %272 = vmatpush1.msra.mxu0 %v119
    %273 = vmatprep.subr.mxu0 0.0
    %274 = vmatpush1.msra.mxu0 %v122
    %275 = vmatprep.subr.mxu0 0.0
    %276 = vmatpush1.msra.mxu0 %v125
    %277 = vmatprep.subr.mxu0 0.0
    %278 = vmatpush1.msra.mxu0 %v128
    %279 = vmatprep.subr.mxu0 0.0
    %280 = vmatpush1.msra.mxu0 %v131
    %281 = vmatprep.subr.mxu0 0.0
    %282 = vmatpush1.msra.mxu0 %v134
    %283 = vmatprep.subr.mxu0 0.0
    %284 = vmatpush1.msra.mxu0 %v137
    %285 = vmatprep.subr.mxu0 0.0
    %286 = vmatpush1.msra.mxu0 %v140
    %287 = vmatprep.subr.mxu0 0.0
    %288 = vmatpush1.msra.mxu0 %v143
    %289 = vmatprep.subr.mxu0 0.0
    %290 = vmatpush1.msra.mxu0 %v146
    %291 = vmatprep.subr.mxu0 0.0
    %292 = vmatpush1.msra.mxu0 %v149
    %293 = vmatprep.subr.mxu0 0.0
    %294 = vmatpush1.msra.mxu0 %v152
    %295 = vmatprep.subr.mxu0 0.0
    %296 = vmatpush1.msra.mxu0 %v155
    %297 = vmatprep.mubr.f32.mxu0 %v57
    %298 = vmatmul.mubr.f32.gmra.mrb[0].mxu0 %v56
    %v299 = vpop.f32.mrb[0].mxu0
    %v300 = vadd.f32 0.0, %v299
    %v301 = vpop.f32.mrb[0].mxu0
    %302 = vmatprep.mubr.f32.mxu0 %v59
    %303 = vmatmul.mubr.f32.gmra.mrb[0].mxu0 %v58
    %v304 = vpop.f32.mrb[0].mxu0
    %v305 = vadd.f32 0.0, %v304
    %v306 = vpop.f32.mrb[0].mxu0
    %307 = vdwg.mxu0
    %v308 = vadd.f32 %v50, %v223
    %v309 = vadd.f32 %v51, %v225
    %v310 = vadd.f32 %v52, %v300
    %v311 = vadd.f32 %v53, %v229
    %v312 = vadd.f32 %v54, %v231
    %v313 = vadd.f32 %v55, %v305
    %314 = vst [vmem:[#allocation2] sm:$0xff] %v308
    %315 = vst [vmem:[#allocation2 + $0x8] sm:$0xff] %v309
    %316 = vst [vmem:[#allocation2 + $0x10] sm:$0xff] %v310
    %317 = vst [vmem:[#allocation2 + $0x18] sm:$0xff] %v311
    %318 = vst [vmem:[#allocation2 + $0x20] sm:$0xff] %v312
    %319 = vst [vmem:[#allocation2 + $0x28] sm:$0xff] %v313
    // Predicated region
    $region22: #{tpu_custom_call.1} parent=1 // pred_check
      %p320 = pneg %p40
    $region23: #{tpu_custom_call.1} parent=1 // pred_check_branch
      %322 = sbr.rel (%p320) target = $region25
    $region24: #{tpu_custom_call.1} parent=1 // pred_region
      %v323 = vld [vmem:[#allocation2] sm:$0xff]
      %v324 = vld [vmem:[#allocation2 + $0x8] sm:$0xff]
      %v325 = vld [vmem:[#allocation2 + $0x10] sm:$0xff]
      %v326 = vld [vmem:[#allocation2 + $0x18] sm:$0xff]
      %v327 = vld [vmem:[#allocation2 + $0x20] sm:$0xff]
      %v328 = vld [vmem:[#allocation2 + $0x28] sm:$0xff]
      %329 = vst [vmem:[#allocation8] sm:$0xff] %v323
      %330 = vst [vmem:[#allocation8 + $0x8] sm:$0xff] %v324
      %331 = vst [vmem:[#allocation8 + $0x10] sm:$0xff] %v325
      %332 = vst [vmem:[#allocation8 + $0x18] sm:$0xff] %v326
      %333 = vst [vmem:[#allocation8 + $0x20] sm:$0xff] %v327
      %334 = vst [vmem:[#allocation8 + $0x28] sm:$0xff] %v328
    $region25: #{tpu_custom_call.1} parent=1 // pred_fallthru
      _
    // Predicated region
    $region26: #{tpu_custom_call.1} parent=1 // pred_check
      _
    $region27: #{tpu_custom_call.1} parent=1 // pred_check_branch
      %336 = sbr.rel (0) target = $region29
    $region28: #{tpu_custom_call.1} parent=1 // pred_region
      %s338 = ssub.s32 768, 768
      %339 = vsyncadd [#allocation5], %s338
      %s340 = sshll.u32 [#allocation8], 4
      %s341 = int_to_ptr.vmem [resolvable:$true] %s340
      %346 = dma.vmem_to_hbm [thread:$0]  %s341, 768, %s2, [#allocation5], 384, 384, 24
    $region29: #{tpu_custom_call.1} parent=1 // pred_fallthru
      _
    // Predicated region
    $region30: #{tpu_custom_call.1} parent=1 // pred_check
      _
    $region31: #{tpu_custom_call.1} parent=1 // pred_check_branch
      %348 = sbr.rel (0) target = $region33
    $region32: #{tpu_custom_call.1} parent=1 // pred_region
      %349 = dma.done [#allocation5], 768
    $region33: #{tpu_custom_call.1} parent=1 // pred_fallthru
      _
    %350 = vsyncpa [#allocation4], 1
    %351 = vsyncpa [#allocation7], 1
    %352 = vsyncpa [#allocation5], 1

</llo_original>
